<compile_context>
chip_gen: v7x
topology: tpu7x:2x2x1
jax: 0.10.0
libtpu: 0.0.40
codegen_flags: <defaults>
</compile_context>

<pallas_src>
import math
from functools import partial

import jax
import jax.numpy as jnp
from jax.experimental import pallas as pl
from jax.experimental.pallas import tpu as pltpu

EPS = 1e-5  # torch.nn.LayerNorm default eps


# ----------------------------- tiling helper -----------------------------

def _round_up(x, m):
    return -(-x // m) * m


def _choose_row_tile(H2, W2, C1, C2, K1e, budget_bytes=8 << 20):
    """Largest divisor of H2 whose per-step VMEM block fits the budget,
    preferring >=2 row tiles so the pipeline / megacore has some depth."""
    def est_bytes(t2):
        A, Bw = t2 + 2, W2 + 1
        M1, M2 = 4 * A * Bw, t2 * Bw
        b = 2 * M1 * _round_up(K1e, 128) * 4        # patch block (double-buffered)
        b += M1 * _round_up(C1, 128) * 4            # conv1-output scratch
        b += M2 * _round_up(9 * C1, 128) * 4        # conv2 im2col scratch
        b += 2 * M2 * _round_up(C2, 128) * 4        # output block (double-buffered)
        return b
    divisors = [d for d in range(1, H2 + 1) if H2 % d == 0]
    fitting = [d for d in divisors if est_bytes(d) <= budget_bytes] or [1]
    multi = [d for d in fitting if H2 // d >= 2]
    return max(multi) if multi else max(fitting)


# ----------------------------- Pallas kernel -----------------------------

def _tokenizer_kernel(patch_ref, w1_ref, w2_ref, b2_ref, *rest,
                      T2, Bw, A, C1, apply_ln):
    if apply_ln:
        g_ref, bt_ref, o_ref, h_ref, c_ref = rest
    else:
        o_ref, h_ref, c_ref = rest

    M2 = T2 * Bw          # conv2 output rows handled this grid step
    PB = A * Bw           # rows per conv1 parity plane

    # conv1: one GEMM. The result rows are the 4 parity planes of the
    # (zero-padded) conv1 output for this row tile; the bias rides in the GEMM
    # through the ones column, and padding-ring / halo rows come out exactly 0
    # because their patch rows (incl. the ones column) are zero.
    h_ref[...] = jnp.dot(patch_ref[0, 0], w1_ref[...],
                         preferred_element_type=jnp.float32)

    # conv2 im2col: each 3x3 tap is a contiguous static row window of h; copy
    # the 9 windows side by side along the contraction (lane) dim once.
    for ky in range(3):
        for kx in range(3):
            off = (2 * (ky % 2) + (kx % 2)) * PB + (ky // 2) * Bw + (kx // 2)
            k = ky * 3 + kx
            c_ref[:, k * C1:(k + 1) * C1] = h_ref[off:off + M2, :]

    # conv2: one K=9*C1 GEMM + bias (+ fused LayerNorm epilogue).
    y = jnp.dot(c_ref[...], w2_ref[...], preferred_element_type=jnp.float32)
    y = y + b2_ref[...]
    if apply_ln:
        mu = jnp.mean(y, axis=-1, keepdims=True)
        ms = jnp.mean(y * y, axis=-1, keepdims=True)
        var = jnp.maximum(ms - mu * mu, 0.0)
        y = (y - mu) * jax.lax.rsqrt(var + EPS) * g_ref[...] + bt_ref[...]
    o_ref[0, 0] = y.astype(o_ref.dtype)


# ----------------------------- JAX-side data plumbing -----------------------------

def _build_conv1_patches(xh, T2, H1, W1, H2, W2):
    """Conv1 im2col, reordered into conv2's per-tile parity-plane layout.

    Returns (B, nt, M1, 9*Cin+1) with M1 = 4*(T2+2)*(W2+1). Row m of tile t is
    parity plane (pr, pc) = divmod(m // ((T2+2)*(W2+1)), 2), (a, bq) =
    divmod(m % ((T2+2)*(W2+1)), W2+1), i.e. the conv1 output at
        r1 = 2*t*T2 - 1 + 2*a + pr,   j1 = 2*bq + pc - 1,
    with all-zero rows wherever (r1, j1) is outside the valid conv1 output
    (this realizes conv2's zero padding and the halo/garbage rows). The last
    column is 1 at valid rows so the conv1 bias is applied by the GEMM itself.
    """
    Bb, H, W, Cin = xh.shape
    nt, A, Bw = H2 // T2, T2 + 2, W2 + 1

    # global conv1 im2col (K ordered (ky, kx, cin)) + ones column
    xp = jnp.pad(xh, ((0, 0), (1, 2 * H1 - H), (1, 2 * W1 - W), (0, 0)))
    taps = [xp[:, ky:ky + 2 * H1:2, kx:kx + 2 * W1:2, :]
            for ky in range(3) for kx in range(3)]
    g = jnp.concatenate(taps + [jnp.ones((Bb, H1, W1, 1), xh.dtype)], axis=-1)

    # pad the conv1-output grid so every (r1, j1) the planes touch is in range
    # and out-of-range positions are exact zeros.
    gp = jnp.pad(g, ((0, 0), (1, 2 * H2 + 3 - H1), (1, 2 * W2 + 1 - W1), (0, 0)))

    planes = [gp[:, pr::2, pc::2, :] for pr in (0, 1) for pc in (0, 1)]
    rows = jnp.arange(nt)[:, None] * T2 + jnp.arange(A)[None, :]   # (nt, A)
    tiled = jnp.stack([pln[:, rows] for pln in planes], axis=2)
    # (Bb, nt, 4, A, Bw, K1e) -> (Bb, nt, M1, K1e)
    return tiled.reshape(Bb, nt, 4 * A * Bw, g.shape[-1])


def conv_tokenizer_forward(x_nchw, p, use_norm):
    """ConvTokenizer.forward: proj (2 convs) -> permute(0,2,3,1) [-> LayerNorm]."""
    xh = jnp.transpose(x_nchw, (0, 2, 3, 1)).astype(jnp.float32)    # NHWC
    Bb, H, W, Cin = xh.shape
    C1, C2 = p['w1'].shape[0], p['w2'].shape[0]
    H1, W1 = (H + 1) // 2, (W + 1) // 2
    H2, W2 = (H1 + 1) // 2, (W1 + 1) // 2
    K1e, K2 = 9 * Cin + 1, 9 * C1

    T2 = _choose_row_tile(H2, W2, C1, C2, K1e)
    nt, A, Bw = H2 // T2, T2 + 2, W2 + 1
    M1, M2 = 4 * A * Bw, T2 * Bw

    patch = _build_conv1_patches(xh, T2, H1, W1, H2, W2)            # (Bb,nt,M1,K1e)
    w1e = jnp.concatenate(
        [jnp.transpose(p['w1'], (2, 3, 1, 0)).reshape(9 * Cin, C1),
         p['b1'][None, :]], axis=0)                                 # (K1e, C1)
    w2m = jnp.transpose(p['w2'], (2, 3, 1, 0)).reshape(K2, C2)      # (9*C1, C2)
    b2 = p['b2'].reshape(1, C2)

    kernel = partial(_tokenizer_kernel, T2=T2, Bw=Bw, A=A, C1=C1,
                     apply_ln=use_norm)

    in_specs = [
        pl.BlockSpec((1, 1, M1, K1e), lambda b, t: (b, t, 0, 0)),
        pl.BlockSpec((K1e, C1), lambda b, t: (0, 0)),
        pl.BlockSpec((K2, C2), lambda b, t: (0, 0)),
        pl.BlockSpec((1, C2), lambda b, t: (0, 0)),
    ]
    args = [patch, w1e, w2m, b2]
    if use_norm:
        in_specs += [pl.BlockSpec((1, C2), lambda b, t: (0, 0)),
                     pl.BlockSpec((1, C2), lambda b, t: (0, 0))]
        args += [p['ln_g'].reshape(1, C2), p['ln_b'].reshape(1, C2)]

    out = pl.pallas_call(
        kernel,
        out_shape=jax.ShapeDtypeStruct((Bb, nt, M2, C2), jnp.float32),
        grid_spec=pltpu.PrefetchScalarGridSpec(
            num_scalar_prefetch=0,
            grid=(Bb, nt),
            in_specs=in_specs,
            out_specs=pl.BlockSpec((1, 1, M2, C2), lambda b, t: (b, t, 0, 0)),
            scratch_shapes=[pltpu.VMEM((M1, C1), jnp.float32),
                            pltpu.VMEM((M2, K2), jnp.float32)]),
        compiler_params=pltpu.CompilerParams(
            dimension_semantics=("parallel", "parallel"),
            vmem_limit_bytes=32 * 1024 * 1024),
    )(*args)

    # drop the one garbage column per row tile and fold tiles back into H/4.
    out = out.reshape(Bb, nt, T2, Bw, C2)[:, :, :, :W2, :]
    return out.reshape(Bb, H2, W2, C2)


# ----------------------------- reference & init -----------------------------

def reference_forward(x_nchw, p, use_norm):
    """Pure-JAX reference mirroring the PyTorch forward."""
    def conv(x, w, b):
        y = jax.lax.conv_general_dilated(
            x, w, window_strides=(2, 2), padding=((1, 1), (1, 1)),
            dimension_numbers=('NCHW', 'OIHW', 'NCHW'),
            precision=jax.lax.Precision.HIGHEST)
        return y + b[None, :, None, None]

    y = conv(x_nchw, p['w1'], p['b1'])
    y = conv(y, p['w2'], p['b2'])
    y = jnp.transpose(y, (0, 2, 3, 1))
    if use_norm:
        mu = y.mean(-1, keepdims=True)
        var = ((y - mu) ** 2).mean(-1, keepdims=True)
        y = (y - mu) / jnp.sqrt(var + EPS) * p['ln_g'] + p['ln_b']
    return y


def init_params(key, in_chans, embed_dim):
    c1 = embed_dim // 2
    k1, k2, k3, k4 = jax.random.split(key, 4)

    def conv_init(k, cout, cin):
        fan_in = cin * 9
        bound = 1.0 / math.sqrt(fan_in)
        kw, kb = jax.random.split(k)
        w = jax.random.uniform(kw, (cout, cin, 3, 3), jnp.float32, -bound, bound)
        b = jax.random.uniform(kb, (cout,), jnp.float32, -bound, bound)
        return w, b

    w1, b1 = conv_init(k1, c1, in_chans)
    w2, b2 = conv_init(k2, embed_dim, c1)
    ln_g = 1.0 + 0.1 * jax.random.normal(k3, (embed_dim,), jnp.float32)
    ln_b = 0.1 * jax.random.normal(k4, (embed_dim,), jnp.float32)
    return {'w1': w1, 'b1': b1, 'w2': w2, 'b2': b2, 'ln_g': ln_g, 'ln_b': ln_b}


if __name__ == "__main__":
    B, in_chans, H, W = 2, 3, 16, 16
    embed_dim = 32

    key = jax.random.PRNGKey(0)
    kx, kp = jax.random.split(key)
    x = jax.random.normal(kx, (B, in_chans, H, W), jnp.float32)
    params = init_params(kp, in_chans, embed_dim)

    forward = jax.jit(conv_tokenizer_forward, static_argnames=("use_norm",))

    # Default module: norm_layer=None
    out0 = jax.block_until_ready(forward(x, params, use_norm=False))
    assert out0.shape == (B, H // 4, W // 4, embed_dim), out0.shape
    err0 = float(jnp.max(jnp.abs(out0 - reference_forward(x, params, False))))

    # norm_layer=nn.LayerNorm variant (LayerNorm fused into the kernel epilogue)
    out1 = jax.block_until_ready(forward(x, params, use_norm=True))
    err1 = float(jnp.max(jnp.abs(out1 - reference_forward(x, params, True))))

    if err0 > 2e-3 or err1 > 2e-3:
        raise AssertionError(f"mismatch vs reference: err(no-norm)={err0}, "
                             f"err(layernorm)={err1}")
    print("KERNEL_OK")
</pallas_src>

<mosaic_0001>
module attributes {stable_mosaic.version = 11 : i64} {
  func.func @_tokenizer_kernel(%arg0: i32, %arg1: i32, %arg2: memref<1x1x80x28xf32, #tpu.memory_space<vmem>>, %arg3: memref<28x16xf32, #tpu.memory_space<vmem>>, %arg4: memref<144x32xf32, #tpu.memory_space<vmem>>, %arg5: memref<1x32xf32, #tpu.memory_space<vmem>>, %arg6: memref<1x1x10x32xf32, #tpu.memory_space<vmem>>, %arg7: memref<80x16xf32, #tpu.memory_space<vmem>>, %arg8: memref<10x144xf32, #tpu.memory_space<vmem>>) attributes {dimension_semantics = [#tpu.dimension_semantics<parallel>, #tpu.dimension_semantics<parallel>], iteration_bounds = array<i64: 2, 2>, scalar_prefetch = 0 : i64, scratch_operands = 2 : i64, tpu.core_type = #tpu.core_type<tc>, window_params = [{transform_indices = @transform_0, window_bounds = array<i64: 1, 1, 80, 28>}, {pipeline_mode = #tpu.pipeline_mode<synchronous>, transform_indices = @transform_1, window_bounds = array<i64: 28, 16>}, {pipeline_mode = #tpu.pipeline_mode<synchronous>, transform_indices = @transform_2, window_bounds = array<i64: 144, 32>}, {pipeline_mode = #tpu.pipeline_mode<synchronous>, transform_indices = @transform_3, window_bounds = array<i64: 1, 32>}, {transform_indices = @transform_4, window_bounds = array<i64: 1, 1, 10, 32>}]} {
    %c0 = arith.constant 0 : index
    %c0_0 = arith.constant 0 : index
    %c0_1 = arith.constant 0 : index
    %c0_2 = arith.constant 0 : index
    %0 = vector.load %arg2[%c0, %c0_0, %c0_1, %c0_2] : memref<1x1x80x28xf32, #tpu.memory_space<vmem>>, vector<1x1x80x28xf32>
    %1 = vector.shape_cast %0 : vector<1x1x80x28xf32> to vector<80x28xf32>
    %c0_3 = arith.constant 0 : index
    %c0_4 = arith.constant 0 : index
    %2 = vector.load %arg3[%c0_3, %c0_4] : memref<28x16xf32, #tpu.memory_space<vmem>>, vector<28x16xf32>
    %cst = arith.constant dense<0.000000e+00> : vector<80x16xf32>
    %3 = tpu.matmul %1, %2, %cst {dimension_numbers = #tpu.dot_dimension_numbers<[1], [0], [0], [1], [0, 0, 1, 1], [], []>} : vector<80x28xf32>, vector<28x16xf32>, vector<80x16xf32> -> vector<80x16xf32>
    %c0_5 = arith.constant 0 : index
    %c0_6 = arith.constant 0 : index
    %4 = vector.load %arg7[%c0_5, %c0_6] : memref<80x16xf32, #tpu.memory_space<vmem>>, vector<80x16xf32>
    tpu.vector_store %arg7[%c0_5, %c0_6], %3 {strides = array<i32>} : memref<80x16xf32, #tpu.memory_space<vmem>>, vector<80x16xf32>,
    %c0_7 = arith.constant 0 : index
    %c0_8 = arith.constant 0 : index
    %5 = vector.load %arg7[%c0_7, %c0_8] : memref<80x16xf32, #tpu.memory_space<vmem>>, vector<10x16xf32>
    %c0_9 = arith.constant 0 : index
    %c0_10 = arith.constant 0 : index
    %6 = vector.load %arg8[%c0_9, %c0_10] : memref<10x144xf32, #tpu.memory_space<vmem>>, vector<10x16xf32>
    tpu.vector_store %arg8[%c0_9, %c0_10], %5 {strides = array<i32>} : memref<10x144xf32, #tpu.memory_space<vmem>>, vector<10x16xf32>,
    %c20 = arith.constant 20 : index
    %c0_11 = arith.constant 0 : index
    %7 = vector.load %arg7[%c20, %c0_11] : memref<80x16xf32, #tpu.memory_space<vmem>>, vector<10x16xf32>
    %c0_12 = arith.constant 0 : index
    %c16 = arith.constant 16 : index
    %8 = vector.load %arg8[%c0_12, %c16] : memref<10x144xf32, #tpu.memory_space<vmem>>, vector<10x16xf32>
    tpu.vector_store %arg8[%c0_12, %c16], %7 {strides = array<i32>} : memref<10x144xf32, #tpu.memory_space<vmem>>, vector<10x16xf32>,
    %c1 = arith.constant 1 : index
    %c0_13 = arith.constant 0 : index
    %9 = vector.load %arg7[%c1, %c0_13] : memref<80x16xf32, #tpu.memory_space<vmem>>, vector<10x16xf32>
    %c0_14 = arith.constant 0 : index
    %c32 = arith.constant 32 : index
    %10 = vector.load %arg8[%c0_14, %c32] : memref<10x144xf32, #tpu.memory_space<vmem>>, vector<10x16xf32>
    tpu.vector_store %arg8[%c0_14, %c32], %9 {strides = array<i32>} : memref<10x144xf32, #tpu.memory_space<vmem>>, vector<10x16xf32>,
    %c40 = arith.constant 40 : index
    %c0_15 = arith.constant 0 : index
    %11 = vector.load %arg7[%c40, %c0_15] : memref<80x16xf32, #tpu.memory_space<vmem>>, vector<10x16xf32>
    %c0_16 = arith.constant 0 : index
    %c48 = arith.constant 48 : index
    %12 = vector.load %arg8[%c0_16, %c48] : memref<10x144xf32, #tpu.memory_space<vmem>>, vector<10x16xf32>
    tpu.vector_store %arg8[%c0_16, %c48], %11 {strides = array<i32>} : memref<10x144xf32, #tpu.memory_space<vmem>>, vector<10x16xf32>,
    %c60 = arith.constant 60 : index
    %c0_17 = arith.constant 0 : index
    %13 = vector.load %arg7[%c60, %c0_17] : memref<80x16xf32, #tpu.memory_space<vmem>>, vector<10x16xf32>
    %c0_18 = arith.constant 0 : index
    %c64 = arith.constant 64 : index
    %14 = vector.load %arg8[%c0_18, %c64] : memref<10x144xf32, #tpu.memory_space<vmem>>, vector<10x16xf32>
    tpu.vector_store %arg8[%c0_18, %c64], %13 {strides = array<i32>} : memref<10x144xf32, #tpu.memory_space<vmem>>, vector<10x16xf32>,
    %c41 = arith.constant 41 : index
    %c0_19 = arith.constant 0 : index
    %15 = vector.load %arg7[%c41, %c0_19] : memref<80x16xf32, #tpu.memory_space<vmem>>, vector<10x16xf32>
    %c0_20 = arith.constant 0 : index
    %c80 = arith.constant 80 : index
    %16 = vector.load %arg8[%c0_20, %c80] : memref<10x144xf32, #tpu.memory_space<vmem>>, vector<10x16xf32>
    tpu.vector_store %arg8[%c0_20, %c80], %15 {strides = array<i32>} : memref<10x144xf32, #tpu.memory_space<vmem>>, vector<10x16xf32>,
    %c5 = arith.constant 5 : index
    %c0_21 = arith.constant 0 : index
    %17 = vector.load %arg7[%c5, %c0_21] : memref<80x16xf32, #tpu.memory_space<vmem>>, vector<10x16xf32>
    %c0_22 = arith.constant 0 : index
    %c96 = arith.constant 96 : index
    %18 = vector.load %arg8[%c0_22, %c96] : memref<10x144xf32, #tpu.memory_space<vmem>>, vector<10x16xf32>
    tpu.vector_store %arg8[%c0_22, %c96], %17 {strides = array<i32>} : memref<10x144xf32, #tpu.memory_space<vmem>>, vector<10x16xf32>,
    %c25 = arith.constant 25 : index
    %c0_23 = arith.constant 0 : index
    %19 = vector.load %arg7[%c25, %c0_23] : memref<80x16xf32, #tpu.memory_space<vmem>>, vector<10x16xf32>
    %c0_24 = arith.constant 0 : index
    %c112 = arith.constant 112 : index
    %20 = vector.load %arg8[%c0_24, %c112] : memref<10x144xf32, #tpu.memory_space<vmem>>, vector<10x16xf32>
    tpu.vector_store %arg8[%c0_24, %c112], %19 {strides = array<i32>} : memref<10x144xf32, #tpu.memory_space<vmem>>, vector<10x16xf32>,
    %c6 = arith.constant 6 : index
    %c0_25 = arith.constant 0 : index
    %21 = vector.load %arg7[%c6, %c0_25] : memref<80x16xf32, #tpu.memory_space<vmem>>, vector<10x16xf32>
    %c0_26 = arith.constant 0 : index
    %c128 = arith.constant 128 : index
    %22 = vector.load %arg8[%c0_26, %c128] : memref<10x144xf32, #tpu.memory_space<vmem>>, vector<10x16xf32>
    tpu.vector_store %arg8[%c0_26, %c128], %21 {strides = array<i32>} : memref<10x144xf32, #tpu.memory_space<vmem>>, vector<10x16xf32>,
    %c0_27 = arith.constant 0 : index
    %c0_28 = arith.constant 0 : index
    %23 = vector.load %arg8[%c0_27, %c0_28] : memref<10x144xf32, #tpu.memory_space<vmem>>, vector<10x144xf32>
    %c0_29 = arith.constant 0 : index
    %c0_30 = arith.constant 0 : index
    %24 = vector.load %arg4[%c0_29, %c0_30] : memref<144x32xf32, #tpu.memory_space<vmem>>, vector<144x32xf32>
    %cst_31 = arith.constant dense<0.000000e+00> : vector<10x32xf32>
    %25 = tpu.matmul %23, %24, %cst_31 {dimension_numbers = #tpu.dot_dimension_numbers<[1], [0], [0], [1], [0, 0, 1, 1], [], []>} : vector<10x144xf32>, vector<144x32xf32>, vector<10x32xf32> -> vector<10x32xf32>
    %c0_32 = arith.constant 0 : index
    %c0_33 = arith.constant 0 : index
    %26 = vector.load %arg5[%c0_32, %c0_33] : memref<1x32xf32, #tpu.memory_space<vmem>>, vector<1x32xf32>
    %27 = vector.broadcast %26 : vector<1x32xf32> to vector<10x32xf32>
    %28 = arith.addf %25, %27 : vector<10x32xf32>
    %c0_34 = arith.constant 0 : index
    %c0_35 = arith.constant 0 : index
    %c0_36 = arith.constant 0 : index
    %c0_37 = arith.constant 0 : index
    %29 = vector.load %arg6[%c0_34, %c0_35, %c0_36, %c0_37] : memref<1x1x10x32xf32, #tpu.memory_space<vmem>>, vector<1x1x10x32xf32>
    %30 = vector.shape_cast %29 : vector<1x1x10x32xf32> to vector<10x32xf32>
    %31 = vector.shape_cast %28 : vector<10x32xf32> to vector<1x1x10x32xf32>
    tpu.vector_store %arg6[%c0_34, %c0_35, %c0_36, %c0_37], %31 {strides = array<i32>} : memref<1x1x10x32xf32, #tpu.memory_space<vmem>>, vector<1x1x10x32xf32>,
    return
  }
  func.func @transform_0(%arg0: i32, %arg1: i32) -> (i32, i32, i32, i32) {
    %c0_i32 = arith.constant 0 : i32
    %c0_i32_0 = arith.constant 0 : i32
    %c0_i32_1 = arith.constant 0 : i32
    return %arg0, %arg1, %c0_i32, %c0_i32_0 : i32, i32, i32, i32
  }
  func.func @transform_1(%arg0: i32, %arg1: i32) -> (i32, i32) {
    %c0_i32 = arith.constant 0 : i32
    %c0_i32_0 = arith.constant 0 : i32
    %c0_i32_1 = arith.constant 0 : i32
    return %c0_i32, %c0_i32_0 : i32, i32
  }
  func.func @transform_2(%arg0: i32, %arg1: i32) -> (i32, i32) {
    %c0_i32 = arith.constant 0 : i32
    %c0_i32_0 = arith.constant 0 : i32
    %c0_i32_1 = arith.constant 0 : i32
    return %c0_i32, %c0_i32_0 : i32, i32
  }
  func.func @transform_3(%arg0: i32, %arg1: i32) -> (i32, i32) {
    %c0_i32 = arith.constant 0 : i32
    %c0_i32_0 = arith.constant 0 : i32
    %c0_i32_1 = arith.constant 0 : i32
    return %c0_i32, %c0_i32_0 : i32, i32
  }
  func.func @transform_4(%arg0: i32, %arg1: i32) -> (i32, i32, i32, i32) {
    %c0_i32 = arith.constant 0 : i32
    %c0_i32_0 = arith.constant 0 : i32
    %c0_i32_1 = arith.constant 0 : i32
    return %arg0, %arg1, %c0_i32, %c0_i32_0 : i32, i32, i32, i32
  }
}

</mosaic_0001>

<llo_original>
// kernel: conv_tokenizer_forward.1
$region0: #{conv_tokenizer_forward.1}
  #allocation0 [shape = 'u32[]', space=smem, size = 0x4, offset = 0x4, fixed_abs, tag = 'smem constant byte address 0x4 - core index']
  #allocation1 [shape = 'u32[144,128]{1,0:T(1,128)}', space=vmem, size = 0x12000, scoped, tag = 'internal scratch']
  #allocation2 [shape = 'f32[80,16]{1,0:T(8,128)}', space=vmem, size = 0xa000, scoped, tag = 'scratch operand']
  #allocation3 [shape = 'f32[10,144]{1,0:T(8,128)}', space=vmem, size = 0x4000, scoped, tag = 'scratch operand']
  %s0 = inlined_call_operand.vmem [shape: f32[2,2,80,28], index: 0, kind: input, shape index: {}]
  %s1 = inlined_call_operand.vmem [shape: f32[28,16], index: 1, kind: input, shape index: {}]
  %s2 = inlined_call_operand.vmem [shape: f32[144,32], index: 2, kind: input, shape index: {}]
  %s3 = inlined_call_operand.vmem [shape: f32[1,32], index: 3, kind: input, shape index: {}]
  %s4 = inlined_call_operand.vmem [shape: f32[2,2,10,32], index: 4, kind: output, shape index: {}]
  %s5 = sld [smem:[#allocation0]]
  $region49: #{conv_tokenizer_forward.1} parent=0
    _
  %s7 = ssub.s32 1, %s5
  %s8 = scalar_select 0, %s7, %s5
  loop: start=0, step=1, limit=6
  $region2: #{conv_tokenizer_forward.1} parent=0 // loop_pre_header
    _
  $region3: #{conv_tokenizer_forward.1} parent=0 // loop_header
    %s10 = sphi 0, %s14
    %p11 = scmp.ge.s32.totalorder %s10, 6
    %s17 = sphi 0, %s29
    %s18 = sphi 0, %s25
    %s19 = sphi 0, %s17
    %s20 = sphi 0, %s18
    %s21 = sphi 0, %s19
    %s22 = sphi 0, %s20
    %s34 = sphi 0, %s36
    %s37 = sphi 0, %s34
    %s38 = sphi 0, %s37
    %s54 = sphi 0, %s38
    %s58 = sphi 0, %s58
    %s60 = sphi 0, %s58
    %s61 = sphi 0, %s60
    %s75 = sphi 0, %s61
    %s79 = sphi 0, %s79
    %s81 = sphi 0, %s79
    %s82 = sphi 0, %s81
    %s96 = sphi 0, %s82
    %s100 = sphi 0, %s100
    %s102 = sphi 0, %s100
    %s103 = sphi 0, %s102
    %s117 = sphi 0, %s103
    %s125 = sphi 0, %s127
    %s128 = sphi 0, %s125
    %s129 = sphi 0, %s128
    %s145 = sphi 0, %s129
  $region4: #{conv_tokenizer_forward.1} parent=0 // loop_header_branch
    %13 = sbr.rel (%p11) target = $region8
  $region5: #{conv_tokenizer_forward.1} parent=0 // loop_body
    %s15 = ssub.s32 %s10, 1
    %s16 = ssub.s32 %s10, 2
    %s23 = sadd.s32 1, %s18
    %p24 = scmp.ge.s32.totalorder %s23, 2
    %s25 = scalar_select %p24, 0, %s23
    %s26 = sadd.s32 1, %s17
    %s27 = scalar_select %p24, %s26, %s17
    %p28 = scmp.ge.s32.totalorder %s27, 2
    %s29 = scalar_select %p28, 0, %s27
    %s30 = ssub.s32 %s17, %s29
    %s31 = ssub.s32 %s18, %s25
    %s32 = sor.u32 %s30, %s31
    %p33 = scmp.eq.s32.totalorder %s32, 0
    %s35 = sadd.s32 %s34, 1
    %s36 = scalar_select %p33, %s34, %s35
    %p39 = pneg %p33
    %p40 = scmp.eq.s32.totalorder %s10, 3
    %p41 = por %p39, %p40
    %p42 = scmp.ne.s32.totalorder %s34, %s37
    %p43 = scmp.eq.s32.totalorder %s10, 0
    %p44 = por %p42, %p43
    %p45 = scmp.ne.s32.totalorder %s34, %s37
    %p46 = scmp.eq.s32.totalorder %s15, 3
    %p47 = por %p45, %p46
    %p48 = scmp.ne.s32.totalorder %s37, %s38
    %p49 = scmp.eq.s32.totalorder %s15, 0
    %p50 = por %p48, %p49
    %p51 = scmp.ne.s32.totalorder %s37, %s38
    %p52 = scmp.eq.s32.totalorder %s16, 3
    %p53 = por %p51, %p52
    %p55 = scmp.ne.s32.totalorder %s38, %s54
    %p56 = scmp.eq.s32.totalorder %s16, 0
    %p57 = por %p55, %p56
    %s59 = sadd.s32 %s58, 1
    %p62 = scmp.eq.s32.totalorder %s10, 3
    %p63 = scmp.ne.s32.totalorder %s58, %s60
    %p64 = scmp.eq.s32.totalorder %s10, 0
    %p65 = por %p63, %p64
    %p66 = scmp.ne.s32.totalorder %s58, %s60
    %p67 = scmp.eq.s32.totalorder %s15, 3
    %p68 = por %p66, %p67
    %p69 = scmp.ne.s32.totalorder %s60, %s61
    %p70 = scmp.eq.s32.totalorder %s15, 0
    %p71 = por %p69, %p70
    %p72 = scmp.ne.s32.totalorder %s60, %s61
    %p73 = scmp.eq.s32.totalorder %s16, 3
    %p74 = por %p72, %p73
    %p76 = scmp.ne.s32.totalorder %s61, %s75
    %p77 = scmp.eq.s32.totalorder %s16, 0
    %p78 = por %p76, %p77
    %s80 = sadd.s32 %s79, 1
    %p83 = scmp.eq.s32.totalorder %s10, 3
    %p84 = scmp.ne.s32.totalorder %s79, %s81
    %p85 = scmp.eq.s32.totalorder %s10, 0
    %p86 = por %p84, %p85
    %p87 = scmp.ne.s32.totalorder %s79, %s81
    %p88 = scmp.eq.s32.totalorder %s15, 3
    %p89 = por %p87, %p88
    %p90 = scmp.ne.s32.totalorder %s81, %s82
    %p91 = scmp.eq.s32.totalorder %s15, 0
    %p92 = por %p90, %p91
    %p93 = scmp.ne.s32.totalorder %s81, %s82
    %p94 = scmp.eq.s32.totalorder %s16, 3
    %p95 = por %p93, %p94
    %p97 = scmp.ne.s32.totalorder %s82, %s96
    %p98 = scmp.eq.s32.totalorder %s16, 0
    %p99 = por %p97, %p98
    %s101 = sadd.s32 %s100, 1
    %p104 = scmp.eq.s32.totalorder %s10, 3
    %p105 = scmp.ne.s32.totalorder %s100, %s102
    %p106 = scmp.eq.s32.totalorder %s10, 0
    %p107 = por %p105, %p106
    %p108 = scmp.ne.s32.totalorder %s100, %s102
    %p109 = scmp.eq.s32.totalorder %s15, 3
    %p110 = por %p108, %p109
    %p111 = scmp.ne.s32.totalorder %s102, %s103
    %p112 = scmp.eq.s32.totalorder %s15, 0
    %p113 = por %p111, %p112
    %p114 = scmp.ne.s32.totalorder %s102, %s103
    %p115 = scmp.eq.s32.totalorder %s16, 3
    %p116 = por %p114, %p115
    %p118 = scmp.ne.s32.totalorder %s103, %s117
    %p119 = scmp.eq.s32.totalorder %s16, 0
    %p120 = por %p118, %p119
    %s121 = ssub.s32 %s17, %s29
    %s122 = ssub.s32 %s18, %s25
    %s123 = sor.u32 %s121, %s122
    %p124 = scmp.eq.s32.totalorder %s123, 0
    %s126 = sadd.s32 %s125, 1
    %s127 = scalar_select %p124, %s125, %s126
    %p130 = pneg %p124
    %p131 = scmp.eq.s32.totalorder %s10, 3
    %p132 = por %p130, %p131
    %p133 = scmp.ne.s32.totalorder %s125, %s128
    %p134 = scmp.eq.s32.totalorder %s10, 0
    %p135 = por %p133, %p134
    %p136 = scmp.ne.s32.totalorder %s125, %s128
    %p137 = scmp.eq.s32.totalorder %s15, 3
    %p138 = por %p136, %p137
    %p139 = scmp.ne.s32.totalorder %s128, %s129
    %p140 = scmp.eq.s32.totalorder %s15, 0
    %p141 = por %p139, %p140
    %p142 = scmp.ne.s32.totalorder %s128, %s129
    %p143 = scmp.eq.s32.totalorder %s16, 3
    %p144 = por %p142, %p143
    %p146 = scmp.ne.s32.totalorder %s129, %s145
    %p147 = scmp.eq.s32.totalorder %s16, 0
    %p148 = por %p146, %p147
    %p149 = scmp.le.s32.totalorder 1, %s10
    %p150 = scmp.lt.s32.totalorder %s10, 5
    %p151 = pnand %p149, %p150
    %p152 = pneg %p151
    // Predicated region
    $region9: #{conv_tokenizer_forward.1} parent=5 // pred_check
      _
    $region10: #{conv_tokenizer_forward.1} parent=5 // pred_check_branch
      %154 = sbr.rel (%p151) target = $region12
    $region11: #{conv_tokenizer_forward.1} parent=5 // pred_region
      %s155 = ssub.s32 %s10, 1
      // Predicated region
      $region13: #{conv_tokenizer_forward.1} parent=11 // pred_check
        %p156 = pneg %p71
      $region14: #{conv_tokenizer_forward.1} parent=11 // pred_check_branch
        %158 = sbr.rel (%p156) target = $region16
      $region15: #{conv_tokenizer_forward.1} parent=11 // pred_region
        _
      $region16: #{conv_tokenizer_forward.1} parent=11 // pred_fallthru
        _
      // Predicated region
      $region17: #{conv_tokenizer_forward.1} parent=11 // pred_check
        %p159 = pneg %p92
      $region18: #{conv_tokenizer_forward.1} parent=11 // pred_check_branch
        %161 = sbr.rel (%p159) target = $region20
      $region19: #{conv_tokenizer_forward.1} parent=11 // pred_region
        _
      $region20: #{conv_tokenizer_forward.1} parent=11 // pred_fallthru
        _
      // Predicated region
      $region21: #{conv_tokenizer_forward.1} parent=11 // pred_check
        %p162 = pneg %p113
      $region22: #{conv_tokenizer_forward.1} parent=11 // pred_check_branch
        %164 = sbr.rel (%p162) target = $region24
      $region23: #{conv_tokenizer_forward.1} parent=11 // pred_region
        _
      $region24: #{conv_tokenizer_forward.1} parent=11 // pred_fallthru
        _
    $region12: #{conv_tokenizer_forward.1} parent=5 // pred_fallthru
      _
    %p165 = scmp.lt.s32.totalorder %s10, 4
    // Predicated region
    $region25: #{conv_tokenizer_forward.1} parent=5 // pred_check
      %p166 = pneg %p165
    $region26: #{conv_tokenizer_forward.1} parent=5 // pred_check_branch
      %168 = sbr.rel (%p166) target = $region28
    $region27: #{conv_tokenizer_forward.1} parent=5 // pred_region
      // Predicated region
      $region29: #{conv_tokenizer_forward.1} parent=27 // pred_check
        %p169 = pneg %p44
      $region30: #{conv_tokenizer_forward.1} parent=27 // pred_check_branch
        %171 = sbr.rel (%p169) target = $region32
      $region31: #{conv_tokenizer_forward.1} parent=27 // pred_region
        %p172 = scmp.lt.s32.totalorder %s17, 1
        %s173 = scalar_select %p172, %s17, 1
        %p174 = scmp.lt.s32.totalorder %s18, 1
        %s175 = scalar_select %p174, %s18, 1
        %s176 = smul.addr %s175, 10
        %s177 = smul.addr %s173, 20
        %s178 = sadd.s32 %s176, %s177
        %s179 = smul.addr %s178, 8
        %s180 = scalar_lea.vmem %s0, %s179
      $region32: #{conv_tokenizer_forward.1} parent=27 // pred_fallthru
        _
    $region28: #{conv_tokenizer_forward.1} parent=5 // pred_fallthru
      _
    %p181 = scmp.le.s32.totalorder 1, %s10
    %p182 = scmp.lt.s32.totalorder %s10, 5
    %p183 = pnand %p181, %p182
    %p184 = pneg %p183
    // Predicated region
    $region33: #{conv_tokenizer_forward.1} parent=5 // pred_check
      _
    $region34: #{conv_tokenizer_forward.1} parent=5 // pred_check_branch
      %186 = sbr.rel (%p183) target = $region36
    $region35: #{conv_tokenizer_forward.1} parent=5 // pred_region
      %s187 = ssub.s32 %s10, 1
      %p188 = scmp.lt.s32.totalorder %s19, 1
      %s189 = scalar_select %p188, %s19, 1
      %p190 = scmp.lt.s32.totalorder %s20, 1
      %s191 = scalar_select %p190, %s20, 1
      %s192 = smul.addr %s191, 10
      %s193 = smul.addr %s189, 20
      %s194 = sadd.s32 %s192, %s193
      %s195 = smul.addr %s194, 8
      %s196 = scalar_lea.vmem %s0, %s195
      %p197 = pneg %p50
      %p198 = pneg %p47
      %p199 = pneg %p71
      %p200 = pneg %p68
      %p201 = pneg %p92
      %p202 = pneg %p89
      %p203 = pneg %p113
      %p204 = pneg %p110
      %p205 = pneg %p141
      %p206 = pneg %p138
      %p207 = scmp.lt.s32.totalorder %s19, 1
      %s208 = scalar_select %p207, %s19, 1
      %p209 = scmp.lt.s32.totalorder %s20, 1
      %s210 = scalar_select %p209, %s20, 1
      %s211 = smul.addr %s210, 2
      %s212 = smul.addr %s208, 4
      %s213 = sadd.s32 %s211, %s212
      %s214 = smul.addr %s213, 8
      %s215 = scalar_lea.vmem %s4, %s214
      %p216 = scmp.lt.s32.totalorder %s19, 1
      %s217 = scalar_select %p216, %s19, 1
      %p218 = scmp.lt.s32.totalorder %s20, 1
      %s219 = scalar_select %p218, %s20, 1
      %s220 = smul.addr %s219, 10
      %s221 = smul.addr %s217, 20
      %s222 = sadd.s32 %s220, %s221
      %s223 = smul.addr %s222, 8
      %s224 = scalar_lea.vmem %s0, %s223
      %p225 = scmp.lt.s32.totalorder %s19, 1
      %s226 = scalar_select %p225, %s19, 1
      %p227 = scmp.lt.s32.totalorder %s20, 1
      %s228 = scalar_select %p227, %s20, 1
      %s229 = smul.addr %s228, 2
      %s230 = smul.addr %s226, 4
      %s231 = sadd.s32 %s229, %s230
      %s232 = smul.addr %s231, 8
      %s233 = scalar_lea.vmem %s4, %s232
      %v234 = vld [vmem:[%s224] sm:$0xff]
      %v235 = vld [vmem:[%s224 + $0x8] sm:$0xff]
      %v236 = vld [vmem:[%s224 + $0x10] sm:$0xff]
      %v237 = vld [vmem:[%s224 + $0x18] sm:$0xff]
      %v238 = vld [vmem:[%s224 + $0x20] sm:$0xff]
      %v239 = vld [vmem:[%s224 + $0x28] sm:$0xff]
      %v240 = vld [vmem:[%s224 + $0x30] sm:$0xff]
      %v241 = vld [vmem:[%s224 + $0x38] sm:$0xff]
      %v242 = vld [vmem:[%s224 + $0x40] sm:$0xff]
      %v243 = vld [vmem:[%s224 + $0x48] sm:$0xff]
      %v244 = vld [vmem:[%s1] sm:$0xff]
      %v245 = vld [vmem:[%s1 + $0x8] sm:$0xff]
      %v246 = vld [vmem:[%s1 + $0x10] sm:$0xff]
      %v247 = vld [vmem:[%s1 + $0x18] sm:$0xf]
      %vm248 = vcmask 228352
      %v250 = vsel %vm248, %v234, 0
      %v253 = vsel %vm248, %v235, 0
      %v256 = vsel %vm248, %v236, 0
      %v259 = vsel %vm248, %v237, 0
      %v262 = vsel %vm248, %v238, 0
      %v265 = vsel %vm248, %v239, 0
      %v268 = vsel %vm248, %v240, 0
      %v271 = vsel %vm248, %v241, 0
      %v274 = vsel %vm248, %v242, 0
      %v277 = vsel %vm248, %v243, 0
      %vm279 = vcmask 1043456
      %v281 = vsel %vm279, %v247, 0
      %283 = vmatprep.subr.mxu0 0.0
      %284 = vmatpush1.msra.mxu0 %v244
      %285 = vmatprep.subr.mxu0 0.0
      %286 = vmatpush1.msra.mxu0 %v245
      %287 = vmatprep.subr.mxu0 0.0
      %288 = vmatpush1.msra.mxu0 %v246
      %289 = vmatprep.subr.mxu0 0.0
      %290 = vmatpush1.msra.mxu0 %v281
      %291 = vmatprep.subr.mxu0 0.0
      %292 = vmatpush1.msra.mxu0 0.0
      %293 = vmatprep.subr.mxu0 0.0
      %294 = vmatpush1.msra.mxu0 0.0
      %295 = vmatprep.subr.mxu0 0.0
      %296 = vmatpush1.msra.mxu0 0.0
      %297 = vmatprep.subr.mxu0 0.0
      %298 = vmatpush1.msra.mxu0 0.0
      %299 = vmatprep.subr.mxu0 0.0
      %300 = vmatpush1.msra.mxu0 0.0
      %301 = vmatprep.subr.mxu0 0.0
      %302 = vmatpush1.msra.mxu0 0.0
      %303 = vmatprep.subr.mxu0 0.0
      %304 = vmatpush1.msra.mxu0 0.0
      %305 = vmatprep.subr.mxu0 0.0
      %306 = vmatpush1.msra.mxu0 0.0
      %307 = vmatprep.subr.mxu0 0.0
      %308 = vmatpush1.msra.mxu0 0.0
      %309 = vmatprep.subr.mxu0 0.0
      %310 = vmatpush1.msra.mxu0 0.0
      %311 = vmatprep.subr.mxu0 0.0
      %312 = vmatpush1.msra.mxu0 0.0
      %313 = vmatprep.subr.mxu0 0.0
      %314 = vmatpush1.msra.mxu0 0.0
      %315 = vmatprep.subr.mxu0 0.0
      %316 = vmatpush1.msra.mxu0 0.0
      %317 = vmatprep.subr.mxu0 0.0
      %318 = vmatpush1.msra.mxu0 0.0
      %319 = vmatprep.subr.mxu0 0.0
      %320 = vmatpush1.msra.mxu0 0.0
      %321 = vmatprep.subr.mxu0 0.0
      %322 = vmatpush1.msra.mxu0 0.0
      %323 = vmatprep.subr.mxu0 0.0
      %324 = vmatpush1.msra.mxu0 0.0
      %325 = vmatprep.subr.mxu0 0.0
      %326 = vmatpush1.msra.mxu0 0.0
      %327 = vmatprep.subr.mxu0 0.0
      %328 = vmatpush1.msra.mxu0 0.0
      %329 = vmatprep.subr.mxu0 0.0
      %330 = vmatpush1.msra.mxu0 0.0
      %331 = vmatprep.subr.mxu0 0.0
      %332 = vmatpush1.msra.mxu0 0.0
      %333 = vmatprep.subr.mxu0 0.0
      %334 = vmatpush1.msra.mxu0 0.0
      %335 = vmatprep.subr.mxu0 0.0
      %336 = vmatpush1.msra.mxu0 0.0
      %337 = vmatprep.subr.mxu0 0.0
      %338 = vmatpush1.msra.mxu0 0.0
      %339 = vmatprep.subr.mxu0 0.0
      %340 = vmatpush1.msra.mxu0 0.0
      %341 = vmatprep.subr.mxu0 0.0
      %342 = vmatpush1.msra.mxu0 0.0
      %343 = vmatprep.subr.mxu0 0.0
      %344 = vmatpush1.msra.mxu0 0.0
      %345 = vmatprep.subr.mxu0 0.0
      %346 = vmatpush1.msra.mxu0 0.0
      %347 = vmatprep.mubr.f32.mxu0 0.0
      %348 = vmatmul.mubr.f32.gmra.mrb[0].mxu0 %v250
      %v349 = vpop.f32.mrb[0].mxu0
      %v350 = vadd.f32 0.0, %v349
      %v351 = vpop.f32.mrb[0].mxu0
      %352 = vmatprep.mubr.f32.mxu0 0.0
      %353 = vmatmul.mubr.f32.gmra.mrb[0].mxu0 %v253
      %v354 = vpop.f32.mrb[0].mxu0
      %v355 = vadd.f32 0.0, %v354
      %v356 = vpop.f32.mrb[0].mxu0
      %357 = vmatprep.mubr.f32.mxu0 0.0
      %358 = vmatmul.mubr.f32.gmra.mrb[0].mxu0 %v256
      %v359 = vpop.f32.mrb[0].mxu0
      %v360 = vadd.f32 0.0, %v359
      %v361 = vpop.f32.mrb[0].mxu0
      %362 = vmatprep.mubr.f32.mxu0 0.0
      %363 = vmatmul.mubr.f32.gmra.mrb[0].mxu0 %v259
      %v364 = vpop.f32.mrb[0].mxu0
      %v365 = vadd.f32 0.0, %v364
      %v366 = vpop.f32.mrb[0].mxu0
      %367 = vmatprep.mubr.f32.mxu0 0.0
      %368 = vmatmul.mubr.f32.gmra.mrb[0].mxu0 %v262
      %v369 = vpop.f32.mrb[0].mxu0
      %v370 = vadd.f32 0.0, %v369
      %v371 = vpop.f32.mrb[0].mxu0
      %372 = vmatprep.mubr.f32.mxu0 0.0
      %373 = vmatmul.mubr.f32.gmra.mrb[0].mxu0 %v265
      %v374 = vpop.f32.mrb[0].mxu0
      %v375 = vadd.f32 0.0, %v374
      %v376 = vpop.f32.mrb[0].mxu0
      %377 = vmatprep.mubr.f32.mxu0 0.0
      %378 = vmatmul.mubr.f32.gmra.mrb[0].mxu0 %v268
      %v379 = vpop.f32.mrb[0].mxu0
      %v380 = vadd.f32 0.0, %v379
      %v381 = vpop.f32.mrb[0].mxu0
      %382 = vmatprep.mubr.f32.mxu0 0.0
      %383 = vmatmul.mubr.f32.gmra.mrb[0].mxu0 %v271
      %v384 = vpop.f32.mrb[0].mxu0
      %v385 = vadd.f32 0.0, %v384
      %v386 = vpop.f32.mrb[0].mxu0
      %387 = vmatprep.mubr.f32.mxu0 0.0
      %388 = vmatmul.mubr.f32.gmra.mrb[0].mxu0 %v274
      %v389 = vpop.f32.mrb[0].mxu0
      %v390 = vadd.f32 0.0, %v389
      %v391 = vpop.f32.mrb[0].mxu0
      %392 = vmatprep.mubr.f32.mxu0 0.0
      %393 = vmatmul.mubr.f32.gmra.mrb[0].mxu0 %v277
      %v394 = vpop.f32.mrb[0].mxu0
      %v395 = vadd.f32 0.0, %v394
      %v396 = vpop.f32.mrb[0].mxu0
      %397 = vdwg.mxu0
      %vm398 = vcmask 130048
      %399 = vst.msk [vmem:[#allocation2] sm:$0xff] %vm398, %v350
      %400 = vst.msk [vmem:[#allocation2 + $0x8] sm:$0xff] %vm398, %v355
      %401 = vst.msk [vmem:[#allocation2 + $0x10] sm:$0xff] %vm398, %v360
      %402 = vst.msk [vmem:[#allocation2 + $0x18] sm:$0xff] %vm398, %v365
      %403 = vst.msk [vmem:[#allocation2 + $0x20] sm:$0xff] %vm398, %v370
      %404 = vst.msk [vmem:[#allocation2 + $0x28] sm:$0xff] %vm398, %v375
      %405 = vst.msk [vmem:[#allocation2 + $0x30] sm:$0xff] %vm398, %v380
      %406 = vst.msk [vmem:[#allocation2 + $0x38] sm:$0xff] %vm398, %v385
      %407 = vst.msk [vmem:[#allocation2 + $0x40] sm:$0xff] %vm398, %v390
      %408 = vst.msk [vmem:[#allocation2 + $0x48] sm:$0xff] %vm398, %v395
      %v409 = vld [vmem:[#allocation2] sm:$0xff]
      %v410 = vld [vmem:[#allocation2 + $0x8] sm:$0x3]
      %411 = vst.msk [vmem:[#allocation3] sm:$0xff] %vm398, %v409
      %vm412 = vcmask 123904
      %413 = vst.msk [vmem:[#allocation3 + $0x10] sm:$0x3] %vm412, %v410
      %v414 = vld [vmem:[#allocation2 + $0x14] sm:$0xff]
      %v415 = vld [vmem:[#allocation2 + $0x1c] sm:$0x3]
      %418 = vrot.lane.b32.xlu0 %v414, 16
      %v419 = vpop.permute.xlu0 %418
      %420 = vrot.lane.b32.xlu0 %v415, 16
      %v421 = vpop.permute.xlu0 %420
      %vm424 = vcmask 261248
      %425 = vst.msk [vmem:[#allocation3] sm:$0xff] %vm424, %v419
      %vm426 = vcmask 255104
      %427 = vst.msk [vmem:[#allocation3 + $0x10] sm:$0x3] %vm426, %v421
      %v428 = vld [vmem:[#allocation2 + $0x1] sm:$0xff]
      %v429 = vld [vmem:[#allocation2 + $0x9] sm:$0x3]
      %432 = vrot.lane.b32.xlu0 %v428, 32
      %v433 = vpop.permute.xlu0 %432
      %434 = vrot.lane.b32.xlu0 %v429, 32
      %v435 = vpop.permute.xlu0 %434
      %vm438 = vcmask 392448
      %439 = vst.msk [vmem:[#allocation3] sm:$0xff] %vm438, %v433
      %vm440 = vcmask 386304
      %441 = vst.msk [vmem:[#allocation3 + $0x10] sm:$0x3] %vm440, %v435
      %v442 = vld [vmem:[#allocation2 + $0x28] sm:$0xff]
      %v443 = vld [vmem:[#allocation2 + $0x30] sm:$0x3]
      %446 = vrot.lane.b32.xlu0 %v442, 48
      %v447 = vpop.permute.xlu0 %446
      %448 = vrot.lane.b32.xlu0 %v443, 48
      %v449 = vpop.permute.xlu0 %448
      %vm452 = vcmask 523648
      %453 = vst.msk [vmem:[#allocation3] sm:$0xff] %vm452, %v447
      %vm454 = vcmask 517504
      %455 = vst.msk [vmem:[#allocation3 + $0x10] sm:$0x3] %vm454, %v449
      %v456 = vld [vmem:[#allocation2 + $0x3c] sm:$0xff]
      %v457 = vld [vmem:[#allocation2 + $0x44] sm:$0x3]
      %460 = vrot.lane.b32.xlu0 %v456, 64
      %v461 = vpop.permute.xlu0 %460
      %462 = vrot.lane.b32.xlu0 %v457, 64
      %v463 = vpop.permute.xlu0 %462
      %vm466 = vcmask 654848
      %467 = vst.msk [vmem:[#allocation3] sm:$0xff] %vm466, %v461
      %vm468 = vcmask 648704
      %469 = vst.msk [vmem:[#allocation3 + $0x10] sm:$0x3] %vm468, %v463
      %v470 = vld [vmem:[#allocation2 + $0x29] sm:$0xff]
      %v471 = vld [vmem:[#allocation2 + $0x31] sm:$0x3]
      %474 = vrot.lane.b32.xlu0 %v470, 80
      %v475 = vpop.permute.xlu0 %474
      %476 = vrot.lane.b32.xlu0 %v471, 80
      %v477 = vpop.permute.xlu0 %476
      %vm480 = vcmask 786048
      %481 = vst.msk [vmem:[#allocation3] sm:$0xff] %vm480, %v475
      %vm482 = vcmask 779904
      %483 = vst.msk [vmem:[#allocation3 + $0x10] sm:$0x3] %vm482, %v477
      %v484 = vld [vmem:[#allocation2 + $0x5] sm:$0xff]
      %v485 = vld [vmem:[#allocation2 + $0xd] sm:$0x3]
      %488 = vrot.lane.b32.xlu0 %v484, 96
      %v489 = vpop.permute.xlu0 %488
      %490 = vrot.lane.b32.xlu0 %v485, 96
      %v491 = vpop.permute.xlu0 %490
      %vm494 = vcmask 917248
      %495 = vst.msk [vmem:[#allocation3] sm:$0xff] %vm494, %v489
      %vm496 = vcmask 911104
      %497 = vst.msk [vmem:[#allocation3 + $0x10] sm:$0x3] %vm496, %v491
      %v498 = vld [vmem:[#allocation2 + $0x19] sm:$0xff]
      %v499 = vld [vmem:[#allocation2 + $0x21] sm:$0x3]
      %502 = vrot.lane.b32.xlu0 %v498, 112
      %v503 = vpop.permute.xlu0 %502
      %504 = vrot.lane.b32.xlu0 %v499, 112
      %v505 = vpop.permute.xlu0 %504
      %vm508 = vcmask 1048448
      %509 = vst.msk [vmem:[#allocation3] sm:$0xff] %vm508, %v503
      %vm510 = vcmask 1042304
      %511 = vst.msk [vmem:[#allocation3 + $0x10] sm:$0x3] %vm510, %v505
      %v512 = vld [vmem:[#allocation2 + $0x6] sm:$0xff]
      %v513 = vld [vmem:[#allocation2 + $0xe] sm:$0x3]
      %514 = vst.msk [vmem:[#allocation3 + $0x8] sm:$0xff] %vm398, %v512
      %515 = vst.msk [vmem:[#allocation3 + $0x18] sm:$0x3] %vm412, %v513
      %v516 = vld [vmem:[#allocation3] sm:$0xff]
      %v517 = vld [vmem:[#allocation3 + $0x8] sm:$0xff]
      %v518 = vld [vmem:[#allocation3 + $0x10] sm:$0x3]
      %v519 = vld [vmem:[#allocation3 + $0x18] sm:$0x3]
      %v520 = vld [vmem:[%s2] sm:$0xff]
      %v521 = vld [vmem:[%s2 + $0x8] sm:$0xff]
      %v522 = vld [vmem:[%s2 + $0x10] sm:$0xff]
      %v523 = vld [vmem:[%s2 + $0x18] sm:$0xff]
      %v524 = vld [vmem:[%s2 + $0x20] sm:$0xff]
      %v525 = vld [vmem:[%s2 + $0x28] sm:$0xff]
      %v526 = vld [vmem:[%s2 + $0x30] sm:$0xff]
      %v527 = vld [vmem:[%s2 + $0x38] sm:$0xff]
      %v528 = vld [vmem:[%s2 + $0x40] sm:$0xff]
      %v529 = vld [vmem:[%s2 + $0x48] sm:$0xff]
      %v530 = vld [vmem:[%s2 + $0x50] sm:$0xff]
      %v531 = vld [vmem:[%s2 + $0x58] sm:$0xff]
      %v532 = vld [vmem:[%s2 + $0x60] sm:$0xff]
      %v533 = vld [vmem:[%s2 + $0x68] sm:$0xff]
      %v534 = vld [vmem:[%s2 + $0x70] sm:$0xff]
      %v535 = vld [vmem:[%s2 + $0x78] sm:$0xff]
      %v536 = vld [vmem:[%s2 + $0x80] sm:$0xff]
      %v537 = vld [vmem:[%s2 + $0x88] sm:$0xff]
      %v538 = vld [vmem:[%s3] sm:$0x1]
      %v540 = vlaneseq
      %v541 = vshrl.u32 %v540, 7
      %v542 = vsub.s32 0, %v541
      %v543 = vrot.slane %v538, %v542
      %v546 = vsel %vm398, %v517, 0
      %v549 = vsel %vm398, %v519, 0
      %551 = vmatprep.subr.mxu0 0.0
      %552 = vmatpush1.msra.mxu0 %v520
      %553 = vmatprep.subr.mxu0 0.0
      %554 = vmatpush1.msra.mxu0 %v521
      %555 = vmatprep.subr.mxu0 0.0
      %556 = vmatpush1.msra.mxu0 %v522
      %557 = vmatprep.subr.mxu0 0.0
      %558 = vmatpush1.msra.mxu0 %v523
      %559 = vmatprep.subr.mxu0 0.0
      %560 = vmatpush1.msra.mxu0 %v524
      %561 = vmatprep.subr.mxu0 0.0
      %562 = vmatpush1.msra.mxu0 %v525
      %563 = vmatprep.subr.mxu0 0.0
      %564 = vmatpush1.msra.mxu0 %v526
      %565 = vmatprep.subr.mxu0 0.0
      %566 = vmatpush1.msra.mxu0 %v527
      %567 = vmatprep.subr.mxu0 0.0
      %568 = vmatpush1.msra.mxu0 %v528
      %569 = vmatprep.subr.mxu0 0.0
      %570 = vmatpush1.msra.mxu0 %v529
      %571 = vmatprep.subr.mxu0 0.0
      %572 = vmatpush1.msra.mxu0 %v530
      %573 = vmatprep.subr.mxu0 0.0
      %574 = vmatpush1.msra.mxu0 %v531
      %575 = vmatprep.subr.mxu0 0.0
      %576 = vmatpush1.msra.mxu0 %v532
      %577 = vmatprep.subr.mxu0 0.0
      %578 = vmatpush1.msra.mxu0 %v533
      %579 = vmatprep.subr.mxu0 0.0
      %580 = vmatpush1.msra.mxu0 %v534
      %581 = vmatprep.subr.mxu0 0.0
      %582 = vmatpush1.msra.mxu0 %v535
      %583 = vmatprep.subr.mxu0 0.0
      %584 = vmatpush1.msra.mxu0 %v536
      %585 = vmatprep.subr.mxu0 0.0
      %586 = vmatpush1.msra.mxu0 %v537
      %587 = vmatprep.subr.mxu0 0.0
      %588 = vmatpush1.msra.mxu0 0.0
      %589 = vmatprep.subr.mxu0 0.0
      %590 = vmatpush1.msra.mxu0 0.0
      %591 = vmatprep.subr.mxu0 0.0
      %592 = vmatpush1.msra.mxu0 0.0
      %593 = vmatprep.subr.mxu0 0.0
      %594 = vmatpush1.msra.mxu0 0.0
      %595 = vmatprep.subr.mxu0 0.0
      %596 = vmatpush1.msra.mxu0 0.0
      %597 = vmatprep.subr.mxu0 0.0
      %598 = vmatpush1.msra.mxu0 0.0
      %599 = vmatprep.subr.mxu0 0.0
      %600 = vmatpush1.msra.mxu0 0.0
      %601 = vmatprep.subr.mxu0 0.0
      %602 = vmatpush1.msra.mxu0 0.0
      %603 = vmatprep.subr.mxu0 0.0
      %604 = vmatpush1.msra.mxu0 0.0
      %605 = vmatprep.subr.mxu0 0.0
      %606 = vmatpush1.msra.mxu0 0.0
      %607 = vmatprep.subr.mxu0 0.0
      %608 = vmatpush1.msra.mxu0 0.0
      %609 = vmatprep.subr.mxu0 0.0
      %610 = vmatpush1.msra.mxu0 0.0
      %611 = vmatprep.subr.mxu0 0.0
      %612 = vmatpush1.msra.mxu0 0.0
      %613 = vmatprep.subr.mxu0 0.0
      %614 = vmatpush1.msra.mxu0 0.0
      %615 = vmatprep.mubr.f32.mxu0 %v546
      %616 = vmatmul.mubr.f32.gmra.mrb[0].mxu0 %v516
      %v617 = vpop.f32.mrb[0].mxu0
      %v618 = vadd.f32 %v543, %v617
      %v619 = vpop.f32.mrb[0].mxu0
      %620 = vmatprep.mubr.f32.mxu0 %v549
      %621 = vmatmul.mubr.f32.gmra.mrb[0].mxu0 %v518
      %v622 = vpop.f32.mrb[0].mxu0
      %v623 = vadd.f32 %v543, %v622
      %v624 = vpop.f32.mrb[0].mxu0
      %625 = vdwg.mxu0
      %vm626 = vcmask 261120
      %627 = vst.msk [vmem:[%s233] sm:$0xff] %vm626, %v618
      %vm628 = vcmask 254976
      %629 = vst.msk [vmem:[%s233 + $0x8] sm:$0x3] %vm628, %v623
      %p630 = scmp.lt.s32.totalorder %s19, 1
      %s631 = scalar_select %p630, %s19, 1
      %p632 = scmp.lt.s32.totalorder %s20, 1
      %s633 = scalar_select %p632, %s20, 1
      %s634 = smul.addr %s633, 2
      %s635 = smul.addr %s631, 4
      %s636 = sadd.s32 %s634, %s635
      %s637 = smul.addr %s636, 8
      %s638 = scalar_lea.vmem %s4, %s637
      // Predicated region
      $region37: #{conv_tokenizer_forward.1} parent=35 // pred_check
        %p639 = pneg %p138
      $region38: #{conv_tokenizer_forward.1} parent=35 // pred_check_branch
        %641 = sbr.rel (%p639) target = $region40
      $region39: #{conv_tokenizer_forward.1} parent=35 // pred_region
        _
      $region40: #{conv_tokenizer_forward.1} parent=35 // pred_fallthru
        _
    $region36: #{conv_tokenizer_forward.1} parent=5 // pred_fallthru
      _
    %p642 = scmp.le.s32.totalorder 2, %s10
    // Predicated region
    $region41: #{conv_tokenizer_forward.1} parent=5 // pred_check
      %p643 = pneg %p642
    $region42: #{conv_tokenizer_forward.1} parent=5 // pred_check_branch
      %645 = sbr.rel (%p643) target = $region44
    $region43: #{conv_tokenizer_forward.1} parent=5 // pred_region
      %s646 = ssub.s32 %s10, 2
      // Predicated region
      $region45: #{conv_tokenizer_forward.1} parent=43 // pred_check
        %p647 = pneg %p144
      $region46: #{conv_tokenizer_forward.1} parent=43 // pred_check_branch
        %649 = sbr.rel (%p647) target = $region48
      $region47: #{conv_tokenizer_forward.1} parent=43 // pred_region
        %p650 = scmp.lt.s32.totalorder %s21, 1
        %s651 = scalar_select %p650, %s21, 1
        %p652 = scmp.lt.s32.totalorder %s22, 1
        %s653 = scalar_select %p652, %s22, 1
        %s654 = smul.addr %s653, 2
        %s655 = smul.addr %s651, 4
        %s656 = sadd.s32 %s654, %s655
        %s657 = smul.addr %s656, 8
        %s658 = scalar_lea.vmem %s4, %s657
      $region48: #{conv_tokenizer_forward.1} parent=43 // pred_fallthru
        _
    $region44: #{conv_tokenizer_forward.1} parent=5 // pred_fallthru
      _
  $region6: #{conv_tokenizer_forward.1} parent=0 // loop_footer
    %s14 = sadd.s32 1, %s10
  $region7: #{conv_tokenizer_forward.1} parent=0 // loop_footer_branch
    %9 = sbr.rel target = $region3
  $region8: #{conv_tokenizer_forward.1} parent=0 // loop_exit
    _

</llo_original>
